<compile_context>
chip_gen: v6e
topology: v6e:2x2x1
jax: 0.10.0
libtpu: 0.0.40
codegen_flags: <defaults>
</compile_context>

<pallas_src>
import functools

import numpy as np
import jax
import jax.numpy as jnp
from jax.experimental import pallas as pl
from jax.experimental.pallas import tpu as pltpu

C_IN, C_HID, C_OUT = 4, 32, 4
N_TRANSFORMS = 3          # t = 0: identity, 1: hflip (reverse W), 2: vflip (reverse H)
IMGS_PER_BLOCK = 1        # images per grid block; raise for large batches (keep >=2 blocks on v7x)


# ----------------------------- host-side permutation matrices -----------------------------

def _build_perms(H, W):
    """(3, hw, hw) f32 0/1 matrices: (x @ perm[t])[:, q] == x[:, map_t(q)].

    map_t is the flip's source-pixel map; flips are involutive, so the same matrix
    implements both the input transform and the output back-transform exactly.
    """
    hw = H * W
    idx = np.arange(hw, dtype=np.int64).reshape(H, W)
    maps = (idx, idx[:, ::-1], idx[::-1, :])          # identity, hflip, vflip
    perms = np.zeros((len(maps), hw, hw), np.float32)
    q = np.arange(hw)
    for t, m in enumerate(maps):
        perms[t, m.reshape(-1), q] = 1.0
    return jnp.asarray(perms)


def _check_perms(H, W):
    # The synthetic net is pointwise, so net(flip(x)) == flip(net(x)) and the
    # end-to-end assert cannot catch a wrong flip map -- validate it directly.
    hw = H * W
    perms = np.asarray(_build_perms(H, W))
    img = np.arange(hw, dtype=np.float32).reshape(1, hw)
    base = np.arange(hw, dtype=np.float32).reshape(H, W)
    for t, expect in ((0, base), (1, base[:, ::-1]), (2, base[::-1, :])):
        got = (img @ perms[t]).reshape(H, W)
        assert np.array_equal(got, expect), f"bad flip map t={t}"


# ----------------------------- fused Pallas kernel -----------------------------

def _tta_kernel(x_ref, perm_ref, w1b_ref, w2b_ref, o_ref, *, mode, n_t, c_in, c_hid, i_blk):
    t = pl.program_id(1)

    perm = perm_ref[t]                       # (hw, hw) 0/1 f32, resident in VMEM for the whole grid
    w1 = w1b_ref[:, :c_in]                   # (C_HID, C_IN)
    b1 = w1b_ref[:, c_in:]                   # (C_HID, 1)
    w2 = w2b_ref[:, :c_hid]                  # (C_OUT, C_HID)
    b2 = w2b_ref[:, c_hid:]                  # (C_OUT, 1)

    def contrib(img):
        # transform -> net -> back-transform for one image (pixels on lanes).
        x = x_ref[img]                                                         # (C_IN, hw)
        xt = jnp.dot(x, perm, preferred_element_type=jnp.float32)              # transform(x)
        h = jnp.dot(w1, xt, preferred_element_type=jnp.float32) + b1
        h = jnp.maximum(h, 0.0)
        y = jnp.dot(w2, h, preferred_element_type=jnp.float32) + b2            # (C_OUT, hw)
        return jnp.dot(y, perm, preferred_element_type=jnp.float32)            # back-transform

    ybs = [contrib(img) for img in range(i_blk)]

    # Output block index ignores t -> o_ref is resident across the T axis:
    # accumulate directly into it (no scratch, no finalize copy).
    @pl.when(t == 0)
    def _():
        for img in range(i_blk):
            o_ref[img] = ybs[img].astype(o_ref.dtype)

    @pl.when(t > 0)
    def _():
        for img in range(i_blk):
            cur = o_ref[img].astype(jnp.float32)
            upd = jnp.maximum(cur, ybs[img]) if mode == "max" else cur + ybs[img]
            o_ref[img] = upd.astype(o_ref.dtype)

    if mode == "mean":
        @pl.when(t == n_t - 1)
        def _():
            for img in range(i_blk):
                o_ref[img] = (o_ref[img].astype(jnp.float32) * (1.0 / n_t)).astype(o_ref.dtype)


def tta_fused_pallas(x3, perms, w1b, w2b, *, mode, imgs_per_block=IMGS_PER_BLOCK):
    """x3: (N, C_IN, H*W) (free view of contiguous NCHW).  Returns (N, C_OUT, H*W)."""
    N, c_in, hw = x3.shape
    n_t = perms.shape[0]
    c_hid, c_out = w1b.shape[0], w2b.shape[0]
    assert w1b.shape[1] == c_in + 1 and w2b.shape[1] == c_hid + 1

    i_blk = min(imgs_per_block, N)
    assert N % i_blk == 0, "batch must be divisible by images-per-block"
    n_blocks = N // i_blk                      # keep >= 2 for v7x megacore

    kern = functools.partial(_tta_kernel, mode=mode, n_t=n_t,
                             c_in=c_in, c_hid=c_hid, i_blk=i_blk)
    return pl.pallas_call(
        kern,
        out_shape=jax.ShapeDtypeStruct((N, c_out, hw), x3.dtype),
        grid_spec=pltpu.PrefetchScalarGridSpec(
            num_scalar_prefetch=0,
            grid=(n_blocks, n_t),              # T innermost -> consecutive accumulation
            in_specs=[
                # input image block: same block for every t -> DMA'd once per block
                pl.BlockSpec((i_blk, c_in, hw), lambda i, t: (i, 0, 0)),
                # all 3 perm matrices, constant index_map -> resident, DMA'd once total
                pl.BlockSpec((n_t, hw, hw), lambda i, t: (0, 0, 0)),
                # coalesced params (bias folded as last column), resident
                pl.BlockSpec(w1b.shape, lambda i, t: (0, 0)),
                pl.BlockSpec(w2b.shape, lambda i, t: (0, 0)),
            ],
            out_specs=pl.BlockSpec((i_blk, c_out, hw), lambda i, t: (i, 0, 0)),
        ),
        compiler_params=pltpu.CompilerParams(
            dimension_semantics=("parallel", "arbitrary")),
    )(x3, perms, w1b, w2b)


# ----------------------------- TTA wrapper (layout plumbing only, all free views) ---------------

class TTAWrapperPallas:
    def __init__(self, params, mode="max"):
        if mode not in ("max", "mean"):
            raise ValueError('TTAWrapper.mode must be "max", "mean".')
        w1, b1, w2, b2 = params
        self.w1b = jnp.concatenate([w1, b1], axis=1)   # (C_HID, C_IN + 1)
        self.w2b = jnp.concatenate([w2, b2], axis=1)   # (C_OUT, C_HID + 1)
        self.mode = mode
        self._perms = {}

    def __call__(self, x_nchw):
        N, C, H, W = x_nchw.shape
        assert C == C_IN
        if (H, W) not in self._perms:
            self._perms[(H, W)] = _build_perms(H, W)
        x3 = x_nchw.reshape(N, C, H * W)               # free reshape of contiguous NCHW
        out3 = tta_fused_pallas(x3, self._perms[(H, W)], self.w1b, self.w2b, mode=self.mode)
        return out3.reshape(N, C_OUT, H, W)            # free reshape back


# ----------------------------- pure-JAX reference -----------------------------

def _net_ref(x_nchw, w1, b1, w2, b2):
    h = jnp.einsum("dc,nchw->ndhw", w1, x_nchw) + b1[:, 0][None, :, None, None]
    h = jnp.maximum(h, 0.0)
    return jnp.einsum("od,ndhw->nohw", w2, h) + b2[:, 0][None, :, None, None]


def _hflip(x):   # reverse W (last axis of NCHW)
    return jnp.flip(x, axis=-1)


def _vflip(x):   # reverse H
    return jnp.flip(x, axis=-2)


def tta_ref(x_nchw, params, mode="max"):
    transforms = [lambda v: v, _hflip, _vflip]
    outs = [tr(_net_ref(tr(x_nchw), *params)) for tr in transforms]
    stk = jnp.stack(outs, axis=0)
    return jnp.max(stk, axis=0) if mode == "max" else jnp.mean(stk, axis=0)


# ----------------------------- main -----------------------------

if __name__ == "__main__":
    key = jax.random.PRNGKey(0)
    k_x, k_w1, k_b1, k_w2, k_b2 = jax.random.split(key, 5)

    # deterministic synthetic parameters (channels-first layout)
    w1 = jax.random.normal(k_w1, (C_HID, C_IN), jnp.float32) * 0.2
    b1 = jax.random.normal(k_b1, (C_HID, 1), jnp.float32) * 0.1
    w2 = jax.random.normal(k_w2, (C_OUT, C_HID), jnp.float32) * 0.2
    b2 = jax.random.normal(k_b2, (C_OUT, 1), jnp.float32) * 0.1
    params = (w1, b1, w2, b2)

    # example input: NCHW like PyTorch, batch=2, channels=4, spatial=16x16
    x = jax.random.normal(k_x, (2, C_IN, 16, 16), jnp.float32)

    _check_perms(16, 16)

    for mode in ("max", "mean"):
        wrapper = TTAWrapperPallas(params, mode=mode)
        out = jax.block_until_ready(wrapper(x))
        ref = jax.block_until_ready(tta_ref(x, params, mode=mode))
        assert out.shape == (2, C_OUT, 16, 16)
        np.testing.assert_allclose(np.asarray(out), np.asarray(ref), rtol=1e-5, atol=1e-5)

    print("KERNEL_OK")
</pallas_src>

<mosaic_0001>
module attributes {stable_mosaic.version = 11 : i64} {
  func.func @_tta_kernel(%arg0: i32, %arg1: i32, %arg2: memref<1x4x256xf32, #tpu.memory_space<vmem>>, %arg3: memref<3x256x256xf32, #tpu.memory_space<vmem>>, %arg4: memref<32x5xf32, #tpu.memory_space<vmem>>, %arg5: memref<4x33xf32, #tpu.memory_space<vmem>>, %arg6: memref<1x4x256xf32, #tpu.memory_space<vmem>>) attributes {dimension_semantics = [#tpu.dimension_semantics<parallel>, #tpu.dimension_semantics<arbitrary>], iteration_bounds = array<i64: 2, 3>, scalar_prefetch = 0 : i64, scratch_operands = 0 : i64, tpu.core_type = #tpu.core_type<tc>, window_params = [{transform_indices = @transform_0, window_bounds = array<i64: 1, 4, 256>}, {pipeline_mode = #tpu.pipeline_mode<synchronous>, transform_indices = @transform_1, window_bounds = array<i64: 3, 256, 256>}, {pipeline_mode = #tpu.pipeline_mode<synchronous>, transform_indices = @transform_2, window_bounds = array<i64: 32, 5>}, {pipeline_mode = #tpu.pipeline_mode<synchronous>, transform_indices = @transform_3, window_bounds = array<i64: 4, 33>}, {transform_indices = @transform_4, window_bounds = array<i64: 1, 4, 256>}]} {
    %0 = arith.index_cast %arg1 : i32 to index
    %c0 = arith.constant 0 : index
    %c0_0 = arith.constant 0 : index
    %1 = vector.load %arg3[%0, %c0, %c0_0] : memref<3x256x256xf32, #tpu.memory_space<vmem>>, vector<1x256x256xf32>
    %2 = vector.shape_cast %1 : vector<1x256x256xf32> to vector<256x256xf32>
    %c0_1 = arith.constant 0 : index
    %c0_2 = arith.constant 0 : index
    %3 = vector.load %arg4[%c0_1, %c0_2] : memref<32x5xf32, #tpu.memory_space<vmem>>, vector<32x4xf32>
    %c0_3 = arith.constant 0 : index
    %c4 = arith.constant 4 : index
    %4 = vector.load %arg4[%c0_3, %c4] : memref<32x5xf32, #tpu.memory_space<vmem>>, vector<32x1xf32>
    %c0_4 = arith.constant 0 : index
    %c0_5 = arith.constant 0 : index
    %5 = vector.load %arg5[%c0_4, %c0_5] : memref<4x33xf32, #tpu.memory_space<vmem>>, vector<4x32xf32>
    %c0_6 = arith.constant 0 : index
    %c32 = arith.constant 32 : index
    %6 = vector.load %arg5[%c0_6, %c32] : memref<4x33xf32, #tpu.memory_space<vmem>>, vector<4x1xf32>
    %c0_7 = arith.constant 0 : index
    %c0_8 = arith.constant 0 : index
    %c0_9 = arith.constant 0 : index
    %7 = vector.load %arg2[%c0_7, %c0_8, %c0_9] : memref<1x4x256xf32, #tpu.memory_space<vmem>>, vector<1x4x256xf32>
    %8 = vector.shape_cast %7 : vector<1x4x256xf32> to vector<4x256xf32>
    %cst = arith.constant dense<0.000000e+00> : vector<4x256xf32>
    %9 = tpu.matmul %8, %2, %cst {dimension_numbers = #tpu.dot_dimension_numbers<[1], [0], [0], [1], [0, 0, 1, 1], [], []>} : vector<4x256xf32>, vector<256x256xf32>, vector<4x256xf32> -> vector<4x256xf32>
    %cst_10 = arith.constant dense<0.000000e+00> : vector<32x256xf32>
    %10 = tpu.matmul %3, %9, %cst_10 {dimension_numbers = #tpu.dot_dimension_numbers<[1], [0], [0], [1], [0, 0, 1, 1], [], []>} : vector<32x4xf32>, vector<4x256xf32>, vector<32x256xf32> -> vector<32x256xf32>
    %11 = vector.broadcast %4 : vector<32x1xf32> to vector<32x256xf32>
    %12 = arith.addf %10, %11 : vector<32x256xf32>
    %cst_11 = arith.constant 0.000000e+00 : f32
    %13 = vector.broadcast %cst_11 : f32 to vector<32x256xf32>
    %14 = arith.maximumf %12, %13 : vector<32x256xf32>
    %cst_12 = arith.constant dense<0.000000e+00> : vector<4x256xf32>
    %15 = tpu.matmul %5, %14, %cst_12 {dimension_numbers = #tpu.dot_dimension_numbers<[1], [0], [0], [1], [0, 0, 1, 1], [], []>} : vector<4x32xf32>, vector<32x256xf32>, vector<4x256xf32> -> vector<4x256xf32>
    %16 = vector.broadcast %6 : vector<4x1xf32> to vector<4x256xf32>
    %17 = arith.addf %15, %16 : vector<4x256xf32>
    %cst_13 = arith.constant dense<0.000000e+00> : vector<4x256xf32>
    %18 = tpu.matmul %17, %2, %cst_13 {dimension_numbers = #tpu.dot_dimension_numbers<[1], [0], [0], [1], [0, 0, 1, 1], [], []>} : vector<4x256xf32>, vector<256x256xf32>, vector<4x256xf32> -> vector<4x256xf32>
    %c0_i32 = arith.constant 0 : i32
    %19 = arith.cmpi eq, %arg1, %c0_i32 : i32
    %20 = arith.extui %19 : i1 to i32
    %c0_i32_14 = arith.constant 0 : i32
    %21 = arith.cmpi ne, %20, %c0_i32_14 : i32
    scf.if %21 {
      %c0_17 = arith.constant 0 : index
      %c0_18 = arith.constant 0 : index
      %c0_19 = arith.constant 0 : index
      %25 = vector.load %arg6[%c0_17, %c0_18, %c0_19] : memref<1x4x256xf32, #tpu.memory_space<vmem>>, vector<1x4x256xf32>
      %26 = vector.shape_cast %25 : vector<1x4x256xf32> to vector<4x256xf32>
      %27 = vector.shape_cast %18 : vector<4x256xf32> to vector<1x4x256xf32>
      tpu.vector_store %arg6[%c0_17, %c0_18, %c0_19], %27 {strides = array<i32>} : memref<1x4x256xf32, #tpu.memory_space<vmem>>, vector<1x4x256xf32>,
    } else {
    }
    %c0_i32_15 = arith.constant 0 : i32
    %22 = arith.cmpi sgt, %arg1, %c0_i32_15 : i32
    %23 = arith.extui %22 : i1 to i32
    %c0_i32_16 = arith.constant 0 : i32
    %24 = arith.cmpi ne, %23, %c0_i32_16 : i32
    scf.if %24 {
      %c0_17 = arith.constant 0 : index
      %c0_18 = arith.constant 0 : index
      %c0_19 = arith.constant 0 : index
      %25 = vector.load %arg6[%c0_17, %c0_18, %c0_19] : memref<1x4x256xf32, #tpu.memory_space<vmem>>, vector<1x4x256xf32>
      %26 = vector.shape_cast %25 : vector<1x4x256xf32> to vector<4x256xf32>
      %27 = arith.maximumf %26, %18 : vector<4x256xf32>
      %c0_20 = arith.constant 0 : index
      %c0_21 = arith.constant 0 : index
      %c0_22 = arith.constant 0 : index
      %28 = vector.load %arg6[%c0_20, %c0_21, %c0_22] : memref<1x4x256xf32, #tpu.memory_space<vmem>>, vector<1x4x256xf32>
      %29 = vector.shape_cast %28 : vector<1x4x256xf32> to vector<4x256xf32>
      %30 = vector.shape_cast %27 : vector<4x256xf32> to vector<1x4x256xf32>
      tpu.vector_store %arg6[%c0_20, %c0_21, %c0_22], %30 {strides = array<i32>} : memref<1x4x256xf32, #tpu.memory_space<vmem>>, vector<1x4x256xf32>,
    } else {
    }
    return
  }
  func.func @transform_0(%arg0: i32, %arg1: i32) -> (i32, i32, i32) {
    %c0_i32 = arith.constant 0 : i32
    %c0_i32_0 = arith.constant 0 : i32
    %c0_i32_1 = arith.constant 0 : i32
    return %arg0, %c0_i32, %c0_i32_0 : i32, i32, i32
  }
  func.func @transform_1(%arg0: i32, %arg1: i32) -> (i32, i32, i32) {
    %c0_i32 = arith.constant 0 : i32
    %c0_i32_0 = arith.constant 0 : i32
    %c0_i32_1 = arith.constant 0 : i32
    %c0_i32_2 = arith.constant 0 : i32
    return %c0_i32, %c0_i32_0, %c0_i32_1 : i32, i32, i32
  }
  func.func @transform_2(%arg0: i32, %arg1: i32) -> (i32, i32) {
    %c0_i32 = arith.constant 0 : i32
    %c0_i32_0 = arith.constant 0 : i32
    %c0_i32_1 = arith.constant 0 : i32
    return %c0_i32, %c0_i32_0 : i32, i32
  }
  func.func @transform_3(%arg0: i32, %arg1: i32) -> (i32, i32) {
    %c0_i32 = arith.constant 0 : i32
    %c0_i32_0 = arith.constant 0 : i32
    %c0_i32_1 = arith.constant 0 : i32
    return %c0_i32, %c0_i32_0 : i32, i32
  }
  func.func @transform_4(%arg0: i32, %arg1: i32) -> (i32, i32, i32) {
    %c0_i32 = arith.constant 0 : i32
    %c0_i32_0 = arith.constant 0 : i32
    %c0_i32_1 = arith.constant 0 : i32
    return %arg0, %c0_i32, %c0_i32_0 : i32, i32, i32
  }
}

</mosaic_0001>

<llo_original>
// kernel: tpu_custom_call.1
$region0: #{tpu_custom_call.1}
  #allocation0 [shape = 'u32[]', space=smem, size = 0x4, offset = 0x4, fixed_abs, tag = 'smem constant byte address 0x4 - core index']
  #allocation1 [shape = 'u32[144,128]{1,0:T(1,128)}', space=vmem, size = 0x12000, scoped, tag = 'internal scratch']
  %s0 = inlined_call_operand.vmem [shape: f32[2,4,256], index: 0, kind: input, shape index: {}]
  %s1 = inlined_call_operand.hbm [shape: f32[3,256,256], index: 1, kind: input, shape index: {}]
  %s2 = inlined_call_operand.vmem [shape: f32[32,5], index: 2, kind: input, shape index: {}]
  %s3 = inlined_call_operand.vmem [shape: f32[4,33], index: 3, kind: input, shape index: {}]
  %s4 = inlined_call_operand.hbm [shape: f32[2,4,256], index: 4, kind: output, shape index: {}]
  %s5 = sld [smem:[#allocation0]]
  $region61: #{tpu_custom_call.1} parent=0
    _
  %s7 = ssub.s32 1, %s5
  %s8 = scalar_select 0, %s7, %s5
  $region1: #{tpu_custom_call.1} parent=0
    #allocation2 [shape = 'u8[786432]{0}', space=vmem, size = 0xc0000, scoped, tag = 'input window, operand 1, single buffered']
    #allocation3 [shape = 's32[2]{0}', space=sflag, size = 0x8, scoped, tag = 'scoped memory for tpu_custom_call.1']
    #allocation4 [shape = 's32[2]{0}', space=sflag, size = 0x8, scoped, tag = 'scoped memory for tpu_custom_call.1']
    #allocation5 [shape = 'u8[8192]{0}', space=vmem, size = 0x2000, scoped, tag = 'output window, operand 0']
    %9 = vsyncpa [#allocation3], 0
    %10 = vsyncpa [#allocation4], 0
    %s11 = scalar_lea.sflag [#allocation4], 1
    %12 = vsyncpa %s11, 0
    loop: start=0, step=1, limit=8
    $region2: #{tpu_custom_call.1} parent=1 // loop_pre_header
      _
    $region3: #{tpu_custom_call.1} parent=1 // loop_header
      %s14 = sphi 0, %s18
      %p15 = scmp.ge.s32.totalorder %s14, 8
      %s21 = sphi 0, %s33
      %s22 = sphi 0, %s29
      %s23 = sphi 0, %s21
      %s24 = sphi 0, %s22
      %s25 = sphi 0, %s23
      %s26 = sphi 0, %s24
      %s36 = sphi 0, %s38
      %s39 = sphi 0, %s36
      %s40 = sphi 0, %s39
      %s56 = sphi 0, %s40
      %s60 = sphi 0, %s60
      %s62 = sphi 0, %s60
      %s63 = sphi 0, %s62
      %s77 = sphi 0, %s63
      %s81 = sphi 0, %s81
      %s83 = sphi 0, %s81
      %s84 = sphi 0, %s83
      %s98 = sphi 0, %s84
      %s102 = sphi 0, %s102
      %s104 = sphi 0, %s102
      %s105 = sphi 0, %s104
      %s119 = sphi 0, %s105
      %s125 = sphi 0, %s127
      %s128 = sphi 0, %s125
      %s129 = sphi 0, %s128
      %s145 = sphi 0, %s129
    $region4: #{tpu_custom_call.1} parent=1 // loop_header_branch
      %17 = sbr.rel (%p15) target = $region8
    $region5: #{tpu_custom_call.1} parent=1 // loop_body
      %s19 = ssub.s32 %s14, 1
      %s20 = ssub.s32 %s14, 2
      %s27 = sadd.s32 1, %s22
      %p28 = scmp.ge.s32.totalorder %s27, 3
      %s29 = scalar_select %p28, 0, %s27
      %s30 = sadd.s32 1, %s21
      %s31 = scalar_select %p28, %s30, %s21
      %p32 = scmp.ge.s32.totalorder %s31, 2
      %s33 = scalar_select %p32, 0, %s31
      %s34 = ssub.s32 %s21, %s33
      %p35 = scmp.eq.s32.totalorder %s34, 0
      %s37 = sadd.s32 %s36, 1
      %s38 = scalar_select %p35, %s36, %s37
      %p41 = pneg %p35
      %p42 = scmp.eq.s32.totalorder %s14, 5
      %p43 = por %p41, %p42
      %p44 = scmp.ne.s32.totalorder %s36, %s39
      %p45 = scmp.eq.s32.totalorder %s14, 0
      %p46 = por %p44, %p45
      %p47 = scmp.ne.s32.totalorder %s36, %s39
      %p48 = scmp.eq.s32.totalorder %s19, 5
      %p49 = por %p47, %p48
      %p50 = scmp.ne.s32.totalorder %s39, %s40
      %p51 = scmp.eq.s32.totalorder %s19, 0
      %p52 = por %p50, %p51
      %p53 = scmp.ne.s32.totalorder %s39, %s40
      %p54 = scmp.eq.s32.totalorder %s20, 5
      %p55 = por %p53, %p54
      %p57 = scmp.ne.s32.totalorder %s40, %s56
      %p58 = scmp.eq.s32.totalorder %s20, 0
      %p59 = por %p57, %p58
      %s61 = sadd.s32 %s60, 1
      %p64 = scmp.eq.s32.totalorder %s14, 5
      %p65 = scmp.ne.s32.totalorder %s60, %s62
      %p66 = scmp.eq.s32.totalorder %s14, 0
      %p67 = por %p65, %p66
      %p68 = scmp.ne.s32.totalorder %s60, %s62
      %p69 = scmp.eq.s32.totalorder %s19, 5
      %p70 = por %p68, %p69
      %p71 = scmp.ne.s32.totalorder %s62, %s63
      %p72 = scmp.eq.s32.totalorder %s19, 0
      %p73 = por %p71, %p72
      %p74 = scmp.ne.s32.totalorder %s62, %s63
      %p75 = scmp.eq.s32.totalorder %s20, 5
      %p76 = por %p74, %p75
      %p78 = scmp.ne.s32.totalorder %s63, %s77
      %p79 = scmp.eq.s32.totalorder %s20, 0
      %p80 = por %p78, %p79
      %s82 = sadd.s32 %s81, 1
      %p85 = scmp.eq.s32.totalorder %s14, 5
      %p86 = scmp.ne.s32.totalorder %s81, %s83
      %p87 = scmp.eq.s32.totalorder %s14, 0
      %p88 = por %p86, %p87
      %p89 = scmp.ne.s32.totalorder %s81, %s83
      %p90 = scmp.eq.s32.totalorder %s19, 5
      %p91 = por %p89, %p90
      %p92 = scmp.ne.s32.totalorder %s83, %s84
      %p93 = scmp.eq.s32.totalorder %s19, 0
      %p94 = por %p92, %p93
      %p95 = scmp.ne.s32.totalorder %s83, %s84
      %p96 = scmp.eq.s32.totalorder %s20, 5
      %p97 = por %p95, %p96
      %p99 = scmp.ne.s32.totalorder %s84, %s98
      %p100 = scmp.eq.s32.totalorder %s20, 0
      %p101 = por %p99, %p100
      %s103 = sadd.s32 %s102, 1
      %p106 = scmp.eq.s32.totalorder %s14, 5
      %p107 = scmp.ne.s32.totalorder %s102, %s104
      %p108 = scmp.eq.s32.totalorder %s14, 0
      %p109 = por %p107, %p108
      %p110 = scmp.ne.s32.totalorder %s102, %s104
      %p111 = scmp.eq.s32.totalorder %s19, 5
      %p112 = por %p110, %p111
      %p113 = scmp.ne.s32.totalorder %s104, %s105
      %p114 = scmp.eq.s32.totalorder %s19, 0
      %p115 = por %p113, %p114
      %p116 = scmp.ne.s32.totalorder %s104, %s105
      %p117 = scmp.eq.s32.totalorder %s20, 5
      %p118 = por %p116, %p117
      %p120 = scmp.ne.s32.totalorder %s105, %s119
      %p121 = scmp.eq.s32.totalorder %s20, 0
      %p122 = por %p120, %p121
      %s123 = ssub.s32 %s21, %s33
      %p124 = scmp.eq.s32.totalorder %s123, 0
      %s126 = sadd.s32 %s125, 1
      %s127 = scalar_select %p124, %s125, %s126
      %p130 = pneg %p124
      %p131 = scmp.eq.s32.totalorder %s14, 5
      %p132 = por %p130, %p131
      %p133 = scmp.ne.s32.totalorder %s125, %s128
      %p134 = scmp.eq.s32.totalorder %s14, 0
      %p135 = por %p133, %p134
      %p136 = scmp.ne.s32.totalorder %s125, %s128
      %p137 = scmp.eq.s32.totalorder %s19, 5
      %p138 = por %p136, %p137
      %p139 = scmp.ne.s32.totalorder %s128, %s129
      %p140 = scmp.eq.s32.totalorder %s19, 0
      %p141 = por %p139, %p140
      %p142 = scmp.ne.s32.totalorder %s128, %s129
      %p143 = scmp.eq.s32.totalorder %s20, 5
      %p144 = por %p142, %p143
      %p146 = scmp.ne.s32.totalorder %s129, %s145
      %p147 = scmp.eq.s32.totalorder %s20, 0
      %p148 = por %p146, %p147
      %p149 = scmp.le.s32.totalorder 1, %s14
      %p150 = scmp.lt.s32.totalorder %s14, 7
      %p151 = pnand %p149, %p150
      %p152 = pneg %p151
      // Predicated region
      $region9: #{tpu_custom_call.1} parent=5 // pred_check
        _
      $region10: #{tpu_custom_call.1} parent=5 // pred_check_branch
        %154 = sbr.rel (%p151) target = $region12
      $region11: #{tpu_custom_call.1} parent=5 // pred_region
        %s155 = ssub.s32 %s14, 1
        // Predicated region
        $region13: #{tpu_custom_call.1} parent=11 // pred_check
          %p156 = pneg %p73
        $region14: #{tpu_custom_call.1} parent=11 // pred_check_branch
          %158 = sbr.rel (%p156) target = $region16
        $region15: #{tpu_custom_call.1} parent=11 // pred_region
          %s160 = ssub.s32 24576, 24576
          %161 = vsyncadd [#allocation3], %s160
          %s162 = sshll.u32 [#allocation2], 4
          %s163 = int_to_ptr.vmem [resolvable:$true] %s162
          %168 = dma.hbm_to_vmem [thread:$0]  %s1, 24576, %s163, [#allocation3], 256, 256, 16
        $region16: #{tpu_custom_call.1} parent=11 // pred_fallthru
          _
        // Predicated region
        $region17: #{tpu_custom_call.1} parent=11 // pred_check
          %p169 = pneg %p94
        $region18: #{tpu_custom_call.1} parent=11 // pred_check_branch
          %171 = sbr.rel (%p169) target = $region20
        $region19: #{tpu_custom_call.1} parent=11 // pred_region
          _
        $region20: #{tpu_custom_call.1} parent=11 // pred_fallthru
          _
        // Predicated region
        $region21: #{tpu_custom_call.1} parent=11 // pred_check
          %p172 = pneg %p115
        $region22: #{tpu_custom_call.1} parent=11 // pred_check_branch
          %174 = sbr.rel (%p172) target = $region24
        $region23: #{tpu_custom_call.1} parent=11 // pred_region
          _
        $region24: #{tpu_custom_call.1} parent=11 // pred_fallthru
          _
      $region12: #{tpu_custom_call.1} parent=5 // pred_fallthru
        _
      %p175 = scmp.lt.s32.totalorder %s14, 6
      // Predicated region
      $region25: #{tpu_custom_call.1} parent=5 // pred_check
        %p176 = pneg %p175
      $region26: #{tpu_custom_call.1} parent=5 // pred_check_branch
        %178 = sbr.rel (%p176) target = $region28
      $region27: #{tpu_custom_call.1} parent=5 // pred_region
        // Predicated region
        $region29: #{tpu_custom_call.1} parent=27 // pred_check
          %p179 = pneg %p46
        $region30: #{tpu_custom_call.1} parent=27 // pred_check_branch
          %181 = sbr.rel (%p179) target = $region32
        $region31: #{tpu_custom_call.1} parent=27 // pred_region
          %p182 = scmp.lt.s32.totalorder %s21, 1
          %s183 = scalar_select %p182, %s21, 1
          %s184 = smul.addr %s183, 2
          %s185 = smul.addr %s184, 4
          %s186 = scalar_lea.vmem %s0, %s185
        $region32: #{tpu_custom_call.1} parent=27 // pred_fallthru
          _
      $region28: #{tpu_custom_call.1} parent=5 // pred_fallthru
        _
      %p187 = scmp.le.s32.totalorder 1, %s14
      %p188 = scmp.lt.s32.totalorder %s14, 7
      %p189 = pnand %p187, %p188
      %p190 = pneg %p189
      // Predicated region
      $region33: #{tpu_custom_call.1} parent=5 // pred_check
        _
      $region34: #{tpu_custom_call.1} parent=5 // pred_check_branch
        %192 = sbr.rel (%p189) target = $region36
      $region35: #{tpu_custom_call.1} parent=5 // pred_region
        %s193 = ssub.s32 %s14, 1
        // Predicated region
        $region37: #{tpu_custom_call.1} parent=35 // pred_check
          %p194 = pneg %p73
        $region38: #{tpu_custom_call.1} parent=35 // pred_check_branch
          %196 = sbr.rel (%p194) target = $region40
        $region39: #{tpu_custom_call.1} parent=35 // pred_region
          %197 = dma.done [#allocation3], 24576
        $region40: #{tpu_custom_call.1} parent=35 // pred_fallthru
          _
        %p198 = scmp.lt.s32.totalorder %s23, 1
        %s199 = scalar_select %p198, %s23, 1
        %s200 = smul.addr %s199, 2
        %s201 = smul.addr %s200, 4
        %s202 = scalar_lea.vmem %s0, %s201
        %p203 = pneg %p52
        %p204 = pneg %p49
        %p205 = pneg %p73
        %p206 = pneg %p70
        %p207 = pneg %p94
        %p208 = pneg %p91
        %p209 = pneg %p115
        %p210 = pneg %p112
        %p211 = pneg %p141
        %p212 = pneg %p138
        %s213 = sand.u32 %s128, 1
        %s214 = scalar_lea.sflag [#allocation4], %s213
        %s215 = sand.u32 %s128, 1
        %s216 = smul.addr %s215, 8
        %s217 = scalar_lea.vmem [#allocation5], %s216
        %p218 = scmp.lt.s32.totalorder %s23, 1
        %s219 = scalar_select %p218, %s23, 1
        %s220 = smul.addr %s219, 2
        %s221 = smul.addr %s220, 4
        %s222 = scalar_lea.vmem %s0, %s221
        %s223 = smul.u32 %s24, 64
        %s224 = smul.addr %s223, 8
        %s225 = scalar_lea.vmem [#allocation2], %s224
        %v226 = vld [vmem:[%s225] sm:$0xff]
        %v227 = vld [vmem:[%s225 + $0x8] sm:$0xff]
        %v228 = vld [vmem:[%s225 + $0x10] sm:$0xff]
        %v229 = vld [vmem:[%s225 + $0x18] sm:$0xff]
        %v230 = vld [vmem:[%s225 + $0x20] sm:$0xff]
        %v231 = vld [vmem:[%s225 + $0x28] sm:$0xff]
        %v232 = vld [vmem:[%s225 + $0x30] sm:$0xff]
        %v233 = vld [vmem:[%s225 + $0x38] sm:$0xff]
        %v234 = vld [vmem:[%s225 + $0x40] sm:$0xff]
        %v235 = vld [vmem:[%s225 + $0x48] sm:$0xff]
        %v236 = vld [vmem:[%s225 + $0x50] sm:$0xff]
        %v237 = vld [vmem:[%s225 + $0x58] sm:$0xff]
        %v238 = vld [vmem:[%s225 + $0x60] sm:$0xff]
        %v239 = vld [vmem:[%s225 + $0x68] sm:$0xff]
        %v240 = vld [vmem:[%s225 + $0x70] sm:$0xff]
        %v241 = vld [vmem:[%s225 + $0x78] sm:$0xff]
        %v242 = vld [vmem:[%s225 + $0x80] sm:$0xff]
        %v243 = vld [vmem:[%s225 + $0x88] sm:$0xff]
        %v244 = vld [vmem:[%s225 + $0x90] sm:$0xff]
        %v245 = vld [vmem:[%s225 + $0x98] sm:$0xff]
        %v246 = vld [vmem:[%s225 + $0xa0] sm:$0xff]
        %v247 = vld [vmem:[%s225 + $0xa8] sm:$0xff]
        %v248 = vld [vmem:[%s225 + $0xb0] sm:$0xff]
        %v249 = vld [vmem:[%s225 + $0xb8] sm:$0xff]
        %v250 = vld [vmem:[%s225 + $0xc0] sm:$0xff]
        %v251 = vld [vmem:[%s225 + $0xc8] sm:$0xff]
        %v252 = vld [vmem:[%s225 + $0xd0] sm:$0xff]
        %v253 = vld [vmem:[%s225 + $0xd8] sm:$0xff]
        %v254 = vld [vmem:[%s225 + $0xe0] sm:$0xff]
        %v255 = vld [vmem:[%s225 + $0xe8] sm:$0xff]
        %v256 = vld [vmem:[%s225 + $0xf0] sm:$0xff]
        %v257 = vld [vmem:[%s225 + $0xf8] sm:$0xff]
        %v258 = vld [vmem:[%s225 + $0x100] sm:$0xff]
        %v259 = vld [vmem:[%s225 + $0x108] sm:$0xff]
        %v260 = vld [vmem:[%s225 + $0x110] sm:$0xff]
        %v261 = vld [vmem:[%s225 + $0x118] sm:$0xff]
        %v262 = vld [vmem:[%s225 + $0x120] sm:$0xff]
        %v263 = vld [vmem:[%s225 + $0x128] sm:$0xff]
        %v264 = vld [vmem:[%s225 + $0x130] sm:$0xff]
        %v265 = vld [vmem:[%s225 + $0x138] sm:$0xff]
        %v266 = vld [vmem:[%s225 + $0x140] sm:$0xff]
        %v267 = vld [vmem:[%s225 + $0x148] sm:$0xff]
        %v268 = vld [vmem:[%s225 + $0x150] sm:$0xff]
        %v269 = vld [vmem:[%s225 + $0x158] sm:$0xff]
        %v270 = vld [vmem:[%s225 + $0x160] sm:$0xff]
        %v271 = vld [vmem:[%s225 + $0x168] sm:$0xff]
        %v272 = vld [vmem:[%s225 + $0x170] sm:$0xff]
        %v273 = vld [vmem:[%s225 + $0x178] sm:$0xff]
        %v274 = vld [vmem:[%s225 + $0x180] sm:$0xff]
        %v275 = vld [vmem:[%s225 + $0x188] sm:$0xff]
        %v276 = vld [vmem:[%s225 + $0x190] sm:$0xff]
        %v277 = vld [vmem:[%s225 + $0x198] sm:$0xff]
        %v278 = vld [vmem:[%s225 + $0x1a0] sm:$0xff]
        %v279 = vld [vmem:[%s225 + $0x1a8] sm:$0xff]
        %v280 = vld [vmem:[%s225 + $0x1b0] sm:$0xff]
        %v281 = vld [vmem:[%s225 + $0x1b8] sm:$0xff]
        %v282 = vld [vmem:[%s225 + $0x1c0] sm:$0xff]
        %v283 = vld [vmem:[%s225 + $0x1c8] sm:$0xff]
        %v284 = vld [vmem:[%s225 + $0x1d0] sm:$0xff]
        %v285 = vld [vmem:[%s225 + $0x1d8] sm:$0xff]
        %v286 = vld [vmem:[%s225 + $0x1e0] sm:$0xff]
        %v287 = vld [vmem:[%s225 + $0x1e8] sm:$0xff]
        %v288 = vld [vmem:[%s225 + $0x1f0] sm:$0xff]
        %v289 = vld [vmem:[%s225 + $0x1f8] sm:$0xff]
        %v290 = vld [vmem:[%s2] sm:$0xff]
        %v291 = vld [vmem:[%s2 + $0x8] sm:$0xff]
        %v292 = vld [vmem:[%s2 + $0x10] sm:$0xff]
        %v293 = vld [vmem:[%s2 + $0x18] sm:$0xff]
        %v294 = vld [vmem:[%s3] sm:$0xf]
        %v295 = vld [vmem:[%s222] sm:$0xff]
        %v297 = vcombine.high %v295, %v295
        %299 = vmatprep.subr.mxu0 %v257
        %300 = vmatpush1.msra.mxu0 %v256
        %301 = vmatprep.subr.mxu0 %v255
        %302 = vmatpush1.msra.mxu0 %v254
        %303 = vmatprep.subr.mxu0 %v253
        %304 = vmatpush1.msra.mxu0 %v252
        %305 = vmatprep.subr.mxu0 %v251
        %306 = vmatpush1.msra.mxu0 %v250
        %307 = vmatprep.subr.mxu0 %v249
        %308 = vmatpush1.msra.mxu0 %v248
        %309 = vmatprep.subr.mxu0 %v247
        %310 = vmatpush1.msra.mxu0 %v246
        %311 = vmatprep.subr.mxu0 %v245
        %312 = vmatpush1.msra.mxu0 %v244
        %313 = vmatprep.subr.mxu0 %v243
        %314 = vmatpush1.msra.mxu0 %v242
        %315 = vmatprep.subr.mxu0 %v241
        %316 = vmatpush1.msra.mxu0 %v240
        %317 = vmatprep.subr.mxu0 %v239
        %318 = vmatpush1.msra.mxu0 %v238
        %319 = vmatprep.subr.mxu0 %v237
        %320 = vmatpush1.msra.mxu0 %v236
        %321 = vmatprep.subr.mxu0 %v235
        %322 = vmatpush1.msra.mxu0 %v234
        %323 = vmatprep.subr.mxu0 %v233
        %324 = vmatpush1.msra.mxu0 %v232
        %325 = vmatprep.subr.mxu0 %v231
        %326 = vmatpush1.msra.mxu0 %v230
        %327 = vmatprep.subr.mxu0 %v229
        %328 = vmatpush1.msra.mxu0 %v228
        %329 = vmatprep.subr.mxu0 %v227
        %330 = vmatpush1.msra.mxu0 %v226
        %331 = vmatprep.subr.mxu0 %v289
        %332 = vmatpush2.msra.mxu0 %v288
        %333 = vmatprep.subr.mxu0 %v287
        %334 = vmatpush2.msra.mxu0 %v286
        %335 = vmatprep.subr.mxu0 %v285
        %336 = vmatpush2.msra.mxu0 %v284
        %337 = vmatprep.subr.mxu0 %v283
        %338 = vmatpush2.msra.mxu0 %v282
        %339 = vmatprep.subr.mxu0 %v281
        %340 = vmatpush2.msra.mxu0 %v280
        %341 = vmatprep.subr.mxu0 %v279
        %342 = vmatpush2.msra.mxu0 %v278
        %343 = vmatprep.subr.mxu0 %v277
        %344 = vmatpush2.msra.mxu0 %v276
        %345 = vmatprep.subr.mxu0 %v275
        %346 = vmatpush2.msra.mxu0 %v274
        %347 = vmatprep.subr.mxu0 %v273
        %348 = vmatpush2.msra.mxu0 %v272
        %349 = vmatprep.subr.mxu0 %v271
        %350 = vmatpush2.msra.mxu0 %v270
        %351 = vmatprep.subr.mxu0 %v269
        %352 = vmatpush2.msra.mxu0 %v268
        %353 = vmatprep.subr.mxu0 %v267
        %354 = vmatpush2.msra.mxu0 %v266
        %355 = vmatprep.subr.mxu0 %v265
        %356 = vmatpush2.msra.mxu0 %v264
        %357 = vmatprep.subr.mxu0 %v263
        %358 = vmatpush2.msra.mxu0 %v262
        %359 = vmatprep.subr.mxu0 %v261
        %360 = vmatpush2.msra.mxu0 %v260
        %361 = vmatprep.subr.mxu0 %v259
        %362 = vmatpush2.msra.mxu0 %v258
        %363 = vmatprep.mubr.f32.mxu0 %v297
        %364 = vmatmul.mubr.f32.gmra.mxu0 %v295
        %v365 = vpop.f32.mrf.mxu0
        %v366 = vadd.f32 0.0, %v365
        %v367 = vpop.f32.mrf.mxu0
        %v368 = vadd.f32 0.0, %v367
        %369 = vdwg.mxu0
        %371 = vset.pattern.permute.xlu0 4
        %372 = vperm.xlu0 %371, %v290
        %v373 = vpop.permute.xlu0 %372
        %376 = vset.pattern.permute.xlu0 4
        %377 = vperm.xlu0 %376, %v291
        %v378 = vpop.permute.xlu0 %377
        %381 = vset.pattern.permute.xlu0 4
        %382 = vperm.xlu0 %381, %v292
        %v383 = vpop.permute.xlu0 %382
        %386 = vset.pattern.permute.xlu0 4
        %387 = vperm.xlu0 %386, %v293
        %v388 = vpop.permute.xlu0 %387
        %vm390 = vcmask 31744
        %v391 = vsel %vm390, %v290, 0
        %v393 = vsel %vm390, %v291, 0
        %v395 = vsel %vm390, %v292, 0
        %v397 = vsel %vm390, %v293, 0
        %vm399 = vcmask 1043456
        %v401 = vsel %vm399, %v366, 0
        %v404 = vsel %vm399, %v368, 0
        %406 = vmatprep.subr.mxu0 0.0
        %407 = vmatpush1.msra.mxu0 0.0
        %408 = vmatprep.subr.mxu0 0.0
        %409 = vmatpush1.msra.mxu0 0.0
        %410 = vmatprep.subr.mxu0 0.0
        %411 = vmatpush1.msra.mxu0 0.0
        %412 = vmatprep.subr.mxu0 0.0
        %413 = vmatpush1.msra.mxu0 0.0
        %414 = vmatprep.subr.mxu0 0.0
        %415 = vmatpush1.msra.mxu0 0.0
        %416 = vmatprep.subr.mxu0 0.0
        %417 = vmatpush1.msra.mxu0 0.0
        %418 = vmatprep.subr.mxu0 0.0
        %419 = vmatpush1.msra.mxu0 0.0
        %420 = vmatprep.subr.mxu0 0.0
        %421 = vmatpush1.msra.mxu0 0.0
        %422 = vmatprep.subr.mxu0 0.0
        %423 = vmatpush1.msra.mxu0 0.0
        %424 = vmatprep.subr.mxu0 0.0
        %425 = vmatpush1.msra.mxu0 0.0
        %426 = vmatprep.subr.mxu0 0.0
        %427 = vmatpush1.msra.mxu0 0.0
        %428 = vmatprep.subr.mxu0 0.0
        %429 = vmatpush1.msra.mxu0 0.0
        %430 = vmatprep.subr.mxu0 0.0
        %431 = vmatpush1.msra.mxu0 0.0
        %432 = vmatprep.subr.mxu0 0.0
        %433 = vmatpush1.msra.mxu0 0.0
        %434 = vmatprep.subr.mxu0 0.0
        %435 = vmatpush1.msra.mxu0 0.0
        %436 = vmatprep.subr.mxu0 %v404
        %437 = vmatpush1.msra.mxu0 %v401
        %438 = vmatprep.subr.mxu0 0.0
        %439 = vmatpush2.msra.mxu0 0.0
        %440 = vmatprep.subr.mxu0 0.0
        %441 = vmatpush2.msra.mxu0 0.0
        %442 = vmatprep.subr.mxu0 0.0
        %443 = vmatpush2.msra.mxu0 0.0
        %444 = vmatprep.subr.mxu0 0.0
        %445 = vmatpush2.msra.mxu0 0.0
        %446 = vmatprep.subr.mxu0 0.0
        %447 = vmatpush2.msra.mxu0 0.0
        %448 = vmatprep.subr.mxu0 0.0
        %449 = vmatpush2.msra.mxu0 0.0
        %450 = vmatprep.subr.mxu0 0.0
        %451 = vmatpush2.msra.mxu0 0.0
        %452 = vmatprep.subr.mxu0 0.0
        %453 = vmatpush2.msra.mxu0 0.0
        %454 = vmatprep.subr.mxu0 0.0
        %455 = vmatpush2.msra.mxu0 0.0
        %456 = vmatprep.subr.mxu0 0.0
        %457 = vmatpush2.msra.mxu0 0.0
        %458 = vmatprep.subr.mxu0 0.0
        %459 = vmatpush2.msra.mxu0 0.0
        %460 = vmatprep.subr.mxu0 0.0
        %461 = vmatpush2.msra.mxu0 0.0
        %462 = vmatprep.subr.mxu0 0.0
        %463 = vmatpush2.msra.mxu0 0.0
        %464 = vmatprep.subr.mxu0 0.0
        %465 = vmatpush2.msra.mxu0 0.0
        %466 = vmatprep.subr.mxu0 0.0
        %467 = vmatpush2.msra.mxu0 0.0
        %468 = vmatprep.subr.mxu0 0.0
        %469 = vmatpush2.msra.mxu0 0.0
        %470 = vmatprep.mubr.f32.mxu0 0.0
        %471 = vmatmul.mubr.f32.gmra.mxu0 %v391
        %v472 = vpop.f32.mrf.mxu0
        %v473 = vadd.f32 %v373, %v472
        %v474 = vpop.f32.mrf.mxu0
        %v475 = vadd.f32 %v373, %v474
        %476 = vmatprep.mubr.f32.mxu0 0.0
        %477 = vmatmul.mubr.f32.gmra.mxu0 %v393
        %v478 = vpop.f32.mrf.mxu0
        %v479 = vadd.f32 %v378, %v478
        %v480 = vpop.f32.mrf.mxu0
        %v481 = vadd.f32 %v378, %v480
        %482 = vmatprep.mubr.f32.mxu0 0.0
        %483 = vmatmul.mubr.f32.gmra.mxu0 %v395
        %v484 = vpop.f32.mrf.mxu0
        %v485 = vadd.f32 %v383, %v484
        %v486 = vpop.f32.mrf.mxu0
        %v487 = vadd.f32 %v383, %v486
        %488 = vmatprep.mubr.f32.mxu0 0.0
        %489 = vmatmul.mubr.f32.gmra.mxu0 %v397
        %v490 = vpop.f32.mrf.mxu0
        %v491 = vadd.f32 %v388, %v490
        %v492 = vpop.f32.mrf.mxu0
        %v493 = vadd.f32 %v388, %v492
        %494 = vdwg.mxu0
        %v495 = vmax.f32 %v473, 0.0
        %v496 = vmax.f32 %v475, 0.0
        %v497 = vmax.f32 %v479, 0.0
        %v498 = vmax.f32 %v481, 0.0
        %v499 = vmax.f32 %v485, 0.0
        %v500 = vmax.f32 %v487, 0.0
        %v501 = vmax.f32 %v491, 0.0
        %v502 = vmax.f32 %v493, 0.0
        %504 = vset.pattern.permute.xlu0 32
        %505 = vperm.xlu0 %504, %v294
        %v506 = vpop.permute.xlu0 %505
        %vm508 = vcmask 261120
        %v509 = vsel %vm508, %v294, 0
        %511 = vmatprep.subr.mxu0 0.0
        %512 = vmatpush1.msra.mxu0 0.0
        %513 = vmatprep.subr.mxu0 0.0
        %514 = vmatpush1.msra.mxu0 0.0
        %515 = vmatprep.subr.mxu0 0.0
        %516 = vmatpush1.msra.mxu0 0.0
        %517 = vmatprep.subr.mxu0 0.0
        %518 = vmatpush1.msra.mxu0 0.0
        %519 = vmatprep.subr.mxu0 0.0
        %520 = vmatpush1.msra.mxu0 0.0
        %521 = vmatprep.subr.mxu0 0.0
        %522 = vmatpush1.msra.mxu0 0.0
        %523 = vmatprep.subr.mxu0 0.0
        %524 = vmatpush1.msra.mxu0 0.0
        %525 = vmatprep.subr.mxu0 0.0
        %526 = vmatpush1.msra.mxu0 0.0
        %527 = vmatprep.subr.mxu0 0.0
        %528 = vmatpush1.msra.mxu0 0.0
        %529 = vmatprep.subr.mxu0 0.0
        %530 = vmatpush1.msra.mxu0 0.0
        %531 = vmatprep.subr.mxu0 0.0
        %532 = vmatpush1.msra.mxu0 0.0
        %533 = vmatprep.subr.mxu0 0.0
        %534 = vmatpush1.msra.mxu0 0.0
        %535 = vmatprep.subr.mxu0 %v502
        %536 = vmatpush1.msra.mxu0 %v501
        %537 = vmatprep.subr.mxu0 %v500
        %538 = vmatpush1.msra.mxu0 %v499
        %539 = vmatprep.subr.mxu0 %v498
        %540 = vmatpush1.msra.mxu0 %v497
        %541 = vmatprep.subr.mxu0 %v496
        %542 = vmatpush1.msra.mxu0 %v495
        %543 = vmatprep.subr.mxu0 0.0
        %544 = vmatpush2.msra.mxu0 0.0
        %545 = vmatprep.subr.mxu0 0.0
        %546 = vmatpush2.msra.mxu0 0.0
        %547 = vmatprep.subr.mxu0 0.0
        %548 = vmatpush2.msra.mxu0 0.0
        %549 = vmatprep.subr.mxu0 0.0
        %550 = vmatpush2.msra.mxu0 0.0
        %551 = vmatprep.subr.mxu0 0.0
        %552 = vmatpush2.msra.mxu0 0.0
        %553 = vmatprep.subr.mxu0 0.0
        %554 = vmatpush2.msra.mxu0 0.0
        %555 = vmatprep.subr.mxu0 0.0
        %556 = vmatpush2.msra.mxu0 0.0
        %557 = vmatprep.subr.mxu0 0.0
        %558 = vmatpush2.msra.mxu0 0.0
        %559 = vmatprep.subr.mxu0 0.0
        %560 = vmatpush2.msra.mxu0 0.0
        %561 = vmatprep.subr.mxu0 0.0
        %562 = vmatpush2.msra.mxu0 0.0
        %563 = vmatprep.subr.mxu0 0.0
        %564 = vmatpush2.msra.mxu0 0.0
        %565 = vmatprep.subr.mxu0 0.0
        %566 = vmatpush2.msra.mxu0 0.0
        %567 = vmatprep.subr.mxu0 0.0
        %568 = vmatpush2.msra.mxu0 0.0
        %569 = vmatprep.subr.mxu0 0.0
        %570 = vmatpush2.msra.mxu0 0.0
        %571 = vmatprep.subr.mxu0 0.0
        %572 = vmatpush2.msra.mxu0 0.0
        %573 = vmatprep.subr.mxu0 0.0
        %574 = vmatpush2.msra.mxu0 0.0
        %575 = vmatprep.mubr.f32.mxu0 0.0
        %576 = vmatmul.mubr.f32.gmra.mxu0 %v509
        %v577 = vpop.f32.mrf.mxu0
        %v578 = vadd.f32 %v506, %v577
        %v579 = vpop.f32.mrf.mxu0
        %v580 = vadd.f32 %v506, %v579
        %581 = vdwg.mxu0
        %582 = vmatprep.subr.mxu0 %v257
        %583 = vmatpush1.msra.mxu0 %v256
        %584 = vmatprep.subr.mxu0 %v255
        %585 = vmatpush1.msra.mxu0 %v254
        %586 = vmatprep.subr.mxu0 %v253
        %587 = vmatpush1.msra.mxu0 %v252
        %588 = vmatprep.subr.mxu0 %v251
        %589 = vmatpush1.msra.mxu0 %v250
        %590 = vmatprep.subr.mxu0 %v249
        %591 = vmatpush1.msra.mxu0 %v248
        %592 = vmatprep.subr.mxu0 %v247
        %593 = vmatpush1.msra.mxu0 %v246
        %594 = vmatprep.subr.mxu0 %v245
        %595 = vmatpush1.msra.mxu0 %v244
        %596 = vmatprep.subr.mxu0 %v243
        %597 = vmatpush1.msra.mxu0 %v242
        %598 = vmatprep.subr.mxu0 %v241
        %599 = vmatpush1.msra.mxu0 %v240
        %600 = vmatprep.subr.mxu0 %v239
        %601 = vmatpush1.msra.mxu0 %v238
        %602 = vmatprep.subr.mxu0 %v237
        %603 = vmatpush1.msra.mxu0 %v236
        %604 = vmatprep.subr.mxu0 %v235
        %605 = vmatpush1.msra.mxu0 %v234
        %606 = vmatprep.subr.mxu0 %v233
        %607 = vmatpush1.msra.mxu0 %v232
        %608 = vmatprep.subr.mxu0 %v231
        %609 = vmatpush1.msra.mxu0 %v230
        %610 = vmatprep.subr.mxu0 %v229
        %611 = vmatpush1.msra.mxu0 %v228
        %612 = vmatprep.subr.mxu0 %v227
        %613 = vmatpush1.msra.mxu0 %v226
        %614 = vmatprep.subr.mxu0 %v289
        %615 = vmatpush2.msra.mxu0 %v288
        %616 = vmatprep.subr.mxu0 %v287
        %617 = vmatpush2.msra.mxu0 %v286
        %618 = vmatprep.subr.mxu0 %v285
        %619 = vmatpush2.msra.mxu0 %v284
        %620 = vmatprep.subr.mxu0 %v283
        %621 = vmatpush2.msra.mxu0 %v282
        %622 = vmatprep.subr.mxu0 %v281
        %623 = vmatpush2.msra.mxu0 %v280
        %624 = vmatprep.subr.mxu0 %v279
        %625 = vmatpush2.msra.mxu0 %v278
        %626 = vmatprep.subr.mxu0 %v277
        %627 = vmatpush2.msra.mxu0 %v276
        %628 = vmatprep.subr.mxu0 %v275
        %629 = vmatpush2.msra.mxu0 %v274
        %630 = vmatprep.subr.mxu0 %v273
        %631 = vmatpush2.msra.mxu0 %v272
        %632 = vmatprep.subr.mxu0 %v271
        %633 = vmatpush2.msra.mxu0 %v270
        %634 = vmatprep.subr.mxu0 %v269
        %635 = vmatpush2.msra.mxu0 %v268
        %636 = vmatprep.subr.mxu0 %v267
        %637 = vmatpush2.msra.mxu0 %v266
        %638 = vmatprep.subr.mxu0 %v265
        %639 = vmatpush2.msra.mxu0 %v264
        %640 = vmatprep.subr.mxu0 %v263
        %641 = vmatpush2.msra.mxu0 %v262
        %642 = vmatprep.subr.mxu0 %v261
        %643 = vmatpush2.msra.mxu0 %v260
        %644 = vmatprep.subr.mxu0 %v259
        %645 = vmatpush2.msra.mxu0 %v258
        %646 = vmatprep.mubr.f32.mxu0 %v580
        %647 = vmatmul.mubr.f32.gmra.mxu0 %v578
        %v648 = vpop.f32.mrf.mxu0
        %v649 = vadd.f32 0.0, %v648
        %v650 = vpop.f32.mrf.mxu0
        %v651 = vadd.f32 0.0, %v650
        %652 = vdwg.mxu0
        %p653 = scmp.eq.s32.totalorder %s24, 0
        // Predicated region
        $region41: #{tpu_custom_call.1} parent=35 // pred_check
          %p654 = pneg %p653
        $region42: #{tpu_custom_call.1} parent=35 // pred_check_branch
          %656 = sbr.rel (%p654) target = $region44
        $region43: #{tpu_custom_call.1} parent=35 // pred_region
          %v659 = vcombine.low %v649, %v651
          %661 = vst [vmem:[%s217] sm:$0xff] %v659
        $region44: #{tpu_custom_call.1} parent=35 // pred_fallthru
          _
        %p662 = scmp.gt.s32.totalorder %s24, 0
        // Predicated region
        $region45: #{tpu_custom_call.1} parent=35 // pred_check
          %p663 = pneg %p662
        $region46: #{tpu_custom_call.1} parent=35 // pred_check_branch
          %665 = sbr.rel (%p663) target = $region48
        $region47: #{tpu_custom_call.1} parent=35 // pred_region
          %v666 = vld [vmem:[%s217] sm:$0xff]
          %v669 = vcombine.low %v649, %v651
          %v671 = vmax.f32 %v666, %v669
          %672 = vst [vmem:[%s217] sm:$0xff] %v671
        $region48: #{tpu_custom_call.1} parent=35 // pred_fallthru
          _
        %s673 = sand.u32 %s128, 1
        %s674 = scalar_lea.sflag [#allocation4], %s673
        %s675 = sand.u32 %s128, 1
        %s676 = smul.addr %s675, 8
        %s677 = scalar_lea.vmem [#allocation5], %s676
        // Predicated region
        $region49: #{tpu_custom_call.1} parent=35 // pred_check
          %p678 = pneg %p138
        $region50: #{tpu_custom_call.1} parent=35 // pred_check_branch
          %680 = sbr.rel (%p678) target = $region52
        $region51: #{tpu_custom_call.1} parent=35 // pred_region
          %s682 = ssub.s32 128, 128
          %683 = vsyncadd %s674, %s682
          %s684 = smul.addr %s23, 2
          %s685 = smul.addr %s684, 64
          %s686 = scalar_lea.hbm %s4, %s685
          %s688 = sshll.u32 %s677, 4
          %s689 = int_to_ptr.vmem [resolvable:$true] %s688
          %691 = dma.vmem_to_hbm [thread:$0]  %s689, 128, %s686, %s674
        $region52: #{tpu_custom_call.1} parent=35 // pred_fallthru
          _
      $region36: #{tpu_custom_call.1} parent=5 // pred_fallthru
        _
      %p692 = scmp.le.s32.totalorder 2, %s14
      // Predicated region
      $region53: #{tpu_custom_call.1} parent=5 // pred_check
        %p693 = pneg %p692
      $region54: #{tpu_custom_call.1} parent=5 // pred_check_branch
        %695 = sbr.rel (%p693) target = $region56
      $region55: #{tpu_custom_call.1} parent=5 // pred_region
        %s696 = ssub.s32 %s14, 2
        // Predicated region
        $region57: #{tpu_custom_call.1} parent=55 // pred_check
          %p697 = pneg %p144
        $region58: #{tpu_custom_call.1} parent=55 // pred_check_branch
          %699 = sbr.rel (%p697) target = $region60
        $region59: #{tpu_custom_call.1} parent=55 // pred_region
          %s700 = sand.u32 %s129, 1
          %s701 = scalar_lea.sflag [#allocation4], %s700
          %s702 = sand.u32 %s129, 1
          %s703 = smul.addr %s702, 8
          %s704 = scalar_lea.vmem [#allocation5], %s703
          %705 = dma.done %s701, 128
        $region60: #{tpu_custom_call.1} parent=55 // pred_fallthru
          _
      $region56: #{tpu_custom_call.1} parent=5 // pred_fallthru
        _
    $region6: #{tpu_custom_call.1} parent=1 // loop_footer
      %s18 = sadd.s32 1, %s14
    $region7: #{tpu_custom_call.1} parent=1 // loop_footer_branch
      %13 = sbr.rel target = $region3
    $region8: #{tpu_custom_call.1} parent=1 // loop_exit
      _
    %706 = vsyncpa [#allocation3], 1
    %s707 = scalar_lea.sflag [#allocation3], 1
    %708 = vsyncpa %s707, 1
    %709 = vsyncpa [#allocation4], 1
    %s710 = scalar_lea.sflag [#allocation4], 1
    %711 = vsyncpa %s710, 1

</llo_original>
